<compile_context>
chip_gen: v6e
topology: v6e:2x2x1
jax: 0.10.0
libtpu: 0.0.40
codegen_flags: <defaults>
</compile_context>

<pallas_src>
import jax
import jax.numpy as jnp
from jax.experimental import pallas as pl
from jax.experimental.pallas import tpu as pltpu


def _make_attention_kernel(*, cached, has_bias, K, TK, compute_dtype):
    ragged_k = (K % TK) != 0

    def kernel(*refs):
        it = iter(refs)
        q_ref = next(it)                            # [TB, Q]
        mem_ref = next(it)                          # [TB, TK, Ks]
        kh_ref = next(it) if cached else None       # [TB, TK, H]
        bias_ref = next(it) if has_bias else None   # [TB, TK]
        wq_ref = next(it)                           # [Q, H]   (resident)
        bq_ref = next(it)                           # [1, H]
        wk_ref = bk_ref = None
        if not cached:
            wk_ref = next(it)                       # [Ks, H]  (resident)
            bk_ref = next(it)                       # [1, H]
        wv_ref = next(it)                           # [1, H]   (wv as a lane row)
        out_ref = next(it)                          # [TB, Ks]
        qh_sc = next(it)                            # [TB, H]  scratch
        m_sc = next(it)                             # [TB, 1]  running max
        l_sc = next(it)                             # [TB, 1]  running denom
        acc_sc = next(it)                           # [TB, Ks] running weighted sum

        j = pl.program_id(1)
        nk = pl.num_programs(1)
        TB, TKb, Ks = mem_ref.shape
        H = wq_ref.shape[1]

        @pl.when(j == 0)
        def _init():
            # q_transform once per batch block, kept resident across K chunks.
            qh_sc[...] = (jnp.dot(q_ref[...], wq_ref[...],
                                  preferred_element_type=jnp.float32) + bq_ref[...])
            m_sc[...] = jnp.full_like(m_sc, -jnp.inf)
            l_sc[...] = jnp.zeros_like(l_sc)
            acc_sc[...] = jnp.zeros_like(acc_sc)

        mem_c = mem_ref[...]                                        # [TB, TK, Ks]
        if cached:
            kh_c = kh_ref[...].astype(compute_dtype)                # [TB, TK, H]
        else:
            kh_flat = (jnp.dot(mem_c.reshape(TB * TKb, Ks).astype(compute_dtype),
                               wk_ref[...].astype(compute_dtype),
                               preferred_element_type=jnp.float32) + bk_ref[...])
            kh_c = kh_flat.reshape(TB, TKb, H).astype(compute_dtype)

        qh = qh_sc[...].astype(compute_dtype)
        t = jnp.tanh(qh[:, None, :] + kh_c)                         # [TB, TK, H]  VPU + EUP
        tw = (t * wv_ref[...].astype(compute_dtype)).astype(jnp.float32)

        # v_transform projection: VPU partial sums over 128-lane slabs (when H > 128), then a
        # single cross-lane reduce -- avoids a degenerate N=1 MXU matmul and cuts XLU work.
        if H > 128 and H % 128 == 0:
            part = tw[:, :, 0:128]
            for h0 in range(128, H, 128):
                part = part + tw[:, :, h0:h0 + 128]
            logits = jnp.sum(part, axis=-1)                         # [TB, TK]
        else:
            logits = jnp.sum(tw, axis=-1)
        # NOTE: the scalar v_transform bias (bv) shifts all logits equally and cancels in the
        # softmax, so it is intentionally omitted.

        if has_bias:
            logits = logits + bias_ref[...]

        if ragged_k:
            k_ids = j * TK + jax.lax.broadcasted_iota(jnp.int32, (TB, TKb), 1)
            kmask = k_ids < K
            logits = jnp.where(kmask, logits, -1e30)

        # Online-softmax update over K chunks.
        m_prev = m_sc[...]
        m_new = jnp.maximum(m_prev, jnp.max(logits, axis=-1, keepdims=True))
        alpha = jnp.exp(m_prev - m_new)
        p = jnp.exp(logits - m_new)                                 # [TB, TK]
        if ragged_k:
            p = jnp.where(kmask, p, 0.0)
        l_sc[...] = alpha * l_sc[...] + jnp.sum(p, axis=-1, keepdims=True)
        # Weighted sum of memory as a VPU FMA + reduce (not a M=1 MXU matmul).
        wmem = p[:, :, None] * mem_c                                # [TB, TK, Ks]
        if ragged_k:
            wmem = jnp.where(kmask[:, :, None], wmem, 0.0)
        acc_sc[...] = alpha * acc_sc[...] + jnp.sum(wmem, axis=1)   # [TB, Ks]
        m_sc[...] = m_new

        @pl.when(j == nk - 1)
        def _finalize():
            out_ref[...] = (acc_sc[...] *
                            pl.reciprocal(l_sc[...], approx=True)).astype(out_ref.dtype)

    return kernel


def _tile_sizes(B, Q, K, Ks, H, cached, has_bias, block_b, block_k):
    """VMEM-budgeted (TB, TK, vmem_limit_bytes)."""
    f32 = 4
    try:
        phys_vmem = int(pltpu.get_tpu_info().vmem_capacity_bytes)
    except Exception:
        phys_vmem = 64 << 20            # conservative (v7x-sized) fallback
    budget = int(phys_vmem * 0.45)      # headroom for double-buffering / compiler temps

    # K tile: full K when small, otherwise a lane-aligned (multiple of 128) chunk.
    block_k = max(128, (block_k // 128) * 128)
    TK = K if K <= block_k else block_k

    # Batch tile from the VMEM budget. Streamed blocks are double-buffered.
    weights = 2 * f32 * (Q * H + (0 if cached else Ks * H) + 3 * H)
    per_row = (2 * f32 * (Q + TK * Ks + (TK * H if cached else 0) + (TK if has_bias else 0))
               + f32 * (2 * Ks + H + 2)             # output block + scratch accumulators
               + f32 * TK * (2 * H + Ks + 2))       # live intermediates (kh/t, p*mem, logits)
    tb = int(max(budget - weights, per_row) // per_row)
    tb = max(8, min(tb, 1024))
    tb = (tb // 8) * 8
    if block_b is not None:
        tb = min(tb, max(8, (block_b // 8) * 8))
    if B >= 16:                         # keep >= 2 batch steps so v7x uses both TensorCores
        tb = min(tb, ((B + 1) // 2 + 7) // 8 * 8)
    if tb >= B:
        tb = B                          # single full-batch block; also avoids host padding

    footprint = weights + tb * per_row
    vmem_limit = int(min(phys_vmem * 0.9, max(32 << 20, 1.5 * footprint)))
    return tb, TK, vmem_limit


def compute_cache(memory, params):
    """Mirror of Attention.compute_cache: k_transform(memory) -> [B, K, H]."""
    return memory @ params["wk"] + params["bk"]


def attention_pallas(query, bias, memory, params, cache=None,
                     block_b=None, block_k=512, compute_dtype=jnp.float32):
    """query: [B,1,Q], bias: [B,1,1,K] or None, memory: [B,K,Ks], cache: [B,K,H] or None.

    compute_dtype=jnp.bfloat16 is allowed on v6e/v7x (tanh / Wk path only; softmax and the
    final accumulation stay f32).  Keep f32 on v5e.
    """
    B, _, Q = query.shape
    _, K, Ks = memory.shape
    wq, bq, wk, bk, wv = (params["wq"], params["bq"], params["wk"],
                          params["bk"], params["wv"])
    H = wq.shape[1]

    cached = cache is not None
    has_bias = bias is not None
    out_dtype = jnp.result_type(query.dtype, memory.dtype)

    TB, TK, vmem_limit = _tile_sizes(B, Q, K, Ks, H, cached, has_bias, block_b, block_k)
    grid = (pl.cdiv(B, TB), pl.cdiv(K, TK))

    q2d = query.reshape(B, Q)
    wv_row = jnp.reshape(wv, (1, H))    # wv as a lane-major row for the VPU projection

    in_specs = [
        pl.BlockSpec((TB, Q), lambda i, j: (i, 0)),           # query rows
        pl.BlockSpec((TB, TK, Ks), lambda i, j: (i, j, 0)),   # memory K-chunk
    ]
    operands = [q2d, memory]
    if cached:
        in_specs.append(pl.BlockSpec((TB, TK, H), lambda i, j: (i, j, 0)))   # cached kh chunk
        operands.append(cache)
    if has_bias:
        bias2d = jnp.broadcast_to(bias, (B, 1, 1, K)).reshape(B, K).astype(jnp.float32)
        in_specs.append(pl.BlockSpec((TB, TK), lambda i, j: (i, j)))         # bias chunk
        operands.append(bias2d)
    in_specs += [pl.BlockSpec((Q, H), lambda i, j: (0, 0)),    # Wq (resident)
                 pl.BlockSpec((1, H), lambda i, j: (0, 0))]    # bq
    operands += [wq, bq]
    if not cached:
        in_specs += [pl.BlockSpec((Ks, H), lambda i, j: (0, 0)),   # Wk (resident)
                     pl.BlockSpec((1, H), lambda i, j: (0, 0))]    # bk
        operands += [wk, bk]
    in_specs.append(pl.BlockSpec((1, H), lambda i, j: (0, 0)))     # wv row
    operands.append(wv_row)

    kernel = _make_attention_kernel(cached=cached, has_bias=has_bias,
                                    K=K, TK=TK, compute_dtype=compute_dtype)

    # TODO(synk): for v5e with Ks < 128 the output store is lane-masked; padding the output
    # slab to 128 lanes would help there but changes glue-side shapes, so it is left as-is.
    out2d = pl.pallas_call(
        kernel,
        out_shape=jax.ShapeDtypeStruct((B, Ks), out_dtype),
        grid_spec=pltpu.PrefetchScalarGridSpec(
            num_scalar_prefetch=0,
            grid=grid,
            in_specs=in_specs,
            out_specs=pl.BlockSpec((TB, Ks), lambda i, j: (i, 0)),
            scratch_shapes=[
                pltpu.VMEM((TB, H), jnp.float32),    # qh (resident across K chunks)
                pltpu.VMEM((TB, 1), jnp.float32),    # running max
                pltpu.VMEM((TB, 1), jnp.float32),    # running denominator
                pltpu.VMEM((TB, Ks), jnp.float32),   # running weighted sum
            ],
        ),
        compiler_params=pltpu.CompilerParams(
            dimension_semantics=("parallel", "arbitrary"),
            vmem_limit_bytes=vmem_limit),
    )(*operands)

    return out2d.reshape(B, 1, Ks)


def attention_reference(query, bias, memory, params):
    """Plain-JAX reference mirroring the PyTorch forward exactly."""
    q = query @ params["wq"] + params["bq"]                  # [B, 1, H]
    k = memory @ params["wk"] + params["bk"]                 # [B, K, H]
    logits = jnp.tanh(q + k) @ params["wv"] + params["bv"]   # [B, K, 1]
    logits = jnp.transpose(logits, (0, 2, 1))                # [B, 1, K]
    logits = logits[:, :, None, :]                           # [B, 1, 1, K]
    if bias is not None:
        logits = logits + bias
    weights = jax.nn.softmax(logits, axis=-1)
    weights = jnp.squeeze(weights, axis=2)                   # [B, 1, K]
    return weights @ memory                                  # [B, 1, Ks]


def init_params(key, q_size, k_size, hidden_size):
    """Deterministic xavier-uniform weights, zero biases (reset_parameters('uniform_scaling'))."""
    k1, k2, k3 = jax.random.split(key, 3)

    def xavier(k, fan_in, fan_out):
        bound = (6.0 / (fan_in + fan_out)) ** 0.5
        return jax.random.uniform(k, (fan_in, fan_out), jnp.float32, -bound, bound)

    return {
        "wq": xavier(k1, q_size, hidden_size),
        "bq": jnp.zeros((1, hidden_size), jnp.float32),
        "wk": xavier(k2, k_size, hidden_size),
        "bk": jnp.zeros((1, hidden_size), jnp.float32),
        "wv": xavier(k3, hidden_size, 1),
        "bv": jnp.zeros((1, 1), jnp.float32),
    }


if __name__ == "__main__":
    root = jax.random.PRNGKey(0)

    def check(case_key, B, K, q_size, k_size, hidden, block_k=512, use_bias=True):
        kq, km, kb, kp = jax.random.split(case_key, 4)
        query = jax.random.normal(kq, (B, 1, q_size), jnp.float32)
        memory = jax.random.normal(km, (B, K, k_size), jnp.float32)
        bias = None
        if use_bias:
            bias = -10.0 * (jax.random.uniform(kb, (B, 1, 1, K)) < 0.25).astype(jnp.float32)
        params = init_params(kp, q_size, k_size, hidden)
        ref = attention_reference(query, bias, memory, params)

        # Fused path (k_transform computed in-kernel, cache=None).
        out = jax.block_until_ready(
            attention_pallas(query, bias, memory, params, block_k=block_k))
        assert out.shape == (B, 1, k_size)
        assert jnp.allclose(out, ref, atol=3e-3, rtol=3e-3), "Pallas output mismatch vs reference"

        # Cached path (precomputed kh, mirrors Attention.compute_cache for decode loops).
        cache = compute_cache(memory, params)
        out_c = jax.block_until_ready(
            attention_pallas(query, bias, memory, params, cache=cache, block_k=block_k))
        assert jnp.allclose(out_c, ref, atol=3e-3, rtol=3e-3), "Pallas cached-path mismatch"

    k0, k1, k2 = jax.random.split(root, 3)
    # Small config matching the module defaults (single K block).
    check(k0, B=2, K=8, q_size=32, k_size=32, hidden=32)
    # No-bias dispatch (bias stream skipped entirely).
    check(k1, B=2, K=8, q_size=32, k_size=32, hidden=32, use_bias=False)
    # K-chunked online-softmax path with a ragged final chunk (K % block_k != 0).
    check(k2, B=2, K=200, q_size=32, k_size=32, hidden=32, block_k=128)

    print("KERNEL_OK")
</pallas_src>

<mosaic_0001>
module attributes {stable_mosaic.version = 11 : i64} {
  func.func @kernel(%arg0: i32, %arg1: i32, %arg2: memref<2x32xf32, #tpu.memory_space<vmem>>, %arg3: memref<2x8x32xf32, #tpu.memory_space<vmem>>, %arg4: memref<2x8xf32, #tpu.memory_space<vmem>>, %arg5: memref<32x32xf32, #tpu.memory_space<vmem>>, %arg6: memref<1x32xf32, #tpu.memory_space<vmem>>, %arg7: memref<32x32xf32, #tpu.memory_space<vmem>>, %arg8: memref<1x32xf32, #tpu.memory_space<vmem>>, %arg9: memref<1x32xf32, #tpu.memory_space<vmem>>, %arg10: memref<2x32xf32, #tpu.memory_space<vmem>>, %arg11: memref<2x32xf32, #tpu.memory_space<vmem>>, %arg12: memref<2x1xf32, #tpu.memory_space<vmem>>, %arg13: memref<2x1xf32, #tpu.memory_space<vmem>>, %arg14: memref<2x32xf32, #tpu.memory_space<vmem>>) attributes {dimension_semantics = [#tpu.dimension_semantics<parallel>, #tpu.dimension_semantics<arbitrary>], iteration_bounds = array<i64: 1, 1>, scalar_prefetch = 0 : i64, scratch_operands = 4 : i64, tpu.core_type = #tpu.core_type<tc>, window_params = [{transform_indices = @transform_0, window_bounds = array<i64: 2, 32>}, {transform_indices = @transform_1, window_bounds = array<i64: 2, 8, 32>}, {transform_indices = @transform_2, window_bounds = array<i64: 2, 8>}, {pipeline_mode = #tpu.pipeline_mode<synchronous>, transform_indices = @transform_3, window_bounds = array<i64: 32, 32>}, {pipeline_mode = #tpu.pipeline_mode<synchronous>, transform_indices = @transform_4, window_bounds = array<i64: 1, 32>}, {pipeline_mode = #tpu.pipeline_mode<synchronous>, transform_indices = @transform_5, window_bounds = array<i64: 32, 32>}, {pipeline_mode = #tpu.pipeline_mode<synchronous>, transform_indices = @transform_6, window_bounds = array<i64: 1, 32>}, {pipeline_mode = #tpu.pipeline_mode<synchronous>, transform_indices = @transform_7, window_bounds = array<i64: 1, 32>}, {transform_indices = @transform_8, window_bounds = array<i64: 2, 32>}]} {
    %c0_i32 = arith.constant 0 : i32
    %0 = arith.cmpi eq, %arg1, %c0_i32 : i32
    %1 = arith.extui %0 : i1 to i32
    %c0_i32_0 = arith.constant 0 : i32
    %2 = arith.cmpi ne, %1, %c0_i32_0 : i32
    scf.if %2 {
      %c0_31 = arith.constant 0 : index
      %c0_32 = arith.constant 0 : index
      %51 = vector.load %arg2[%c0_31, %c0_32] : memref<2x32xf32, #tpu.memory_space<vmem>>, vector<2x32xf32>
      %c0_33 = arith.constant 0 : index
      %c0_34 = arith.constant 0 : index
      %52 = vector.load %arg5[%c0_33, %c0_34] : memref<32x32xf32, #tpu.memory_space<vmem>>, vector<32x32xf32>
      %cst_35 = arith.constant dense<0.000000e+00> : vector<2x32xf32>
      %53 = tpu.matmul %51, %52, %cst_35 {dimension_numbers = #tpu.dot_dimension_numbers<[1], [0], [0], [1], [0, 0, 1, 1], [], []>} : vector<2x32xf32>, vector<32x32xf32>, vector<2x32xf32> -> vector<2x32xf32>
      %c0_36 = arith.constant 0 : index
      %c0_37 = arith.constant 0 : index
      %54 = vector.load %arg6[%c0_36, %c0_37] : memref<1x32xf32, #tpu.memory_space<vmem>>, vector<1x32xf32>
      %55 = vector.broadcast %54 : vector<1x32xf32> to vector<2x32xf32>
      %56 = arith.addf %53, %55 : vector<2x32xf32>
      %c0_38 = arith.constant 0 : index
      %c0_39 = arith.constant 0 : index
      %57 = vector.load %arg11[%c0_38, %c0_39] : memref<2x32xf32, #tpu.memory_space<vmem>>, vector<2x32xf32>
      tpu.vector_store %arg11[%c0_38, %c0_39], %56 {strides = array<i32>} : memref<2x32xf32, #tpu.memory_space<vmem>>, vector<2x32xf32>,
      %cst_40 = arith.constant 0xFF800000 : f32
      %58 = vector.broadcast %cst_40 : f32 to vector<2x1xf32>
      %c0_41 = arith.constant 0 : index
      %c0_42 = arith.constant 0 : index
      %59 = vector.load %arg12[%c0_41, %c0_42] : memref<2x1xf32, #tpu.memory_space<vmem>>, vector<2x1xf32>
      tpu.vector_store %arg12[%c0_41, %c0_42], %58 {strides = array<i32>} : memref<2x1xf32, #tpu.memory_space<vmem>>, vector<2x1xf32>,
      %cst_43 = arith.constant 0.000000e+00 : f32
      %60 = vector.broadcast %cst_43 : f32 to vector<2x1xf32>
      %c0_44 = arith.constant 0 : index
      %c0_45 = arith.constant 0 : index
      %61 = vector.load %arg13[%c0_44, %c0_45] : memref<2x1xf32, #tpu.memory_space<vmem>>, vector<2x1xf32>
      tpu.vector_store %arg13[%c0_44, %c0_45], %60 {strides = array<i32>} : memref<2x1xf32, #tpu.memory_space<vmem>>, vector<2x1xf32>,
      %cst_46 = arith.constant 0.000000e+00 : f32
      %62 = vector.broadcast %cst_46 : f32 to vector<2x32xf32>
      %c0_47 = arith.constant 0 : index
      %c0_48 = arith.constant 0 : index
      %63 = vector.load %arg14[%c0_47, %c0_48] : memref<2x32xf32, #tpu.memory_space<vmem>>, vector<2x32xf32>
      tpu.vector_store %arg14[%c0_47, %c0_48], %62 {strides = array<i32>} : memref<2x32xf32, #tpu.memory_space<vmem>>, vector<2x32xf32>,
    } else {
    }
    %c0 = arith.constant 0 : index
    %c0_1 = arith.constant 0 : index
    %c0_2 = arith.constant 0 : index
    %3 = vector.load %arg3[%c0, %c0_1, %c0_2] : memref<2x8x32xf32, #tpu.memory_space<vmem>>, vector<2x8x32xf32>
    %4 = vector.shape_cast %3 : vector<2x8x32xf32> to vector<16x32xf32>
    %c0_3 = arith.constant 0 : index
    %c0_4 = arith.constant 0 : index
    %5 = vector.load %arg7[%c0_3, %c0_4] : memref<32x32xf32, #tpu.memory_space<vmem>>, vector<32x32xf32>
    %cst = arith.constant dense<0.000000e+00> : vector<16x32xf32>
    %6 = tpu.matmul %4, %5, %cst {dimension_numbers = #tpu.dot_dimension_numbers<[1], [0], [0], [1], [0, 0, 1, 1], [], []>} : vector<16x32xf32>, vector<32x32xf32>, vector<16x32xf32> -> vector<16x32xf32>
    %c0_5 = arith.constant 0 : index
    %c0_6 = arith.constant 0 : index
    %7 = vector.load %arg8[%c0_5, %c0_6] : memref<1x32xf32, #tpu.memory_space<vmem>>, vector<1x32xf32>
    %8 = vector.broadcast %7 : vector<1x32xf32> to vector<16x32xf32>
    %9 = arith.addf %6, %8 : vector<16x32xf32>
    %10 = vector.shape_cast %9 : vector<16x32xf32> to vector<2x8x32xf32>
    %c0_7 = arith.constant 0 : index
    %c0_8 = arith.constant 0 : index
    %11 = vector.load %arg11[%c0_7, %c0_8] : memref<2x32xf32, #tpu.memory_space<vmem>>, vector<2x32xf32>
    %12 = vector.shape_cast %11 : vector<2x32xf32> to vector<2x1x32xf32>
    %13 = vector.broadcast %12 : vector<2x1x32xf32> to vector<2x8x32xf32>
    %14 = arith.addf %13, %10 : vector<2x8x32xf32>
    %15 = math.tanh %14 : vector<2x8x32xf32>
    %c0_9 = arith.constant 0 : index
    %c0_10 = arith.constant 0 : index
    %16 = vector.load %arg9[%c0_9, %c0_10] : memref<1x32xf32, #tpu.memory_space<vmem>>, vector<1x32xf32>
    %17 = vector.shape_cast %16 : vector<1x32xf32> to vector<1x1x32xf32>
    %18 = vector.broadcast %17 : vector<1x1x32xf32> to vector<2x8x32xf32>
    %19 = arith.mulf %15, %18 : vector<2x8x32xf32>
    %cst_11 = arith.constant dense<0.000000e+00> : vector<2x8xf32>
    %20 = vector.multi_reduction <add>, %19, %cst_11 [2] : vector<2x8x32xf32> to vector<2x8xf32>
    %c0_12 = arith.constant 0 : index
    %c0_13 = arith.constant 0 : index
    %21 = vector.load %arg4[%c0_12, %c0_13] : memref<2x8xf32, #tpu.memory_space<vmem>>, vector<2x8xf32>
    %22 = arith.addf %20, %21 : vector<2x8xf32>
    %c0_14 = arith.constant 0 : index
    %c0_15 = arith.constant 0 : index
    %23 = vector.load %arg12[%c0_14, %c0_15] : memref<2x1xf32, #tpu.memory_space<vmem>>, vector<2x1xf32>
    %cst_16 = arith.constant dense<0xFF800000> : vector<2xf32>
    %24 = vector.multi_reduction <maximumf>, %22, %cst_16 [1] : vector<2x8xf32> to vector<2xf32>
    %25 = vector.shape_cast %24 : vector<2xf32> to vector<2x1xf32>
    %26 = arith.maximumf %23, %25 : vector<2x1xf32>
    %27 = arith.subf %23, %26 : vector<2x1xf32>
    %28 = math.exp %27 : vector<2x1xf32>
    %29 = vector.broadcast %26 : vector<2x1xf32> to vector<2x8xf32>
    %30 = arith.subf %22, %29 : vector<2x8xf32>
    %31 = math.exp %30 : vector<2x8xf32>
    %c0_17 = arith.constant 0 : index
    %c0_18 = arith.constant 0 : index
    %32 = vector.load %arg13[%c0_17, %c0_18] : memref<2x1xf32, #tpu.memory_space<vmem>>, vector<2x1xf32>
    %33 = arith.mulf %28, %32 : vector<2x1xf32>
    %cst_19 = arith.constant dense<0.000000e+00> : vector<2xf32>
    %34 = vector.multi_reduction <add>, %31, %cst_19 [1] : vector<2x8xf32> to vector<2xf32>
    %35 = vector.shape_cast %34 : vector<2xf32> to vector<2x1xf32>
    %36 = arith.addf %33, %35 : vector<2x1xf32>
    %c0_20 = arith.constant 0 : index
    %c0_21 = arith.constant 0 : index
    %37 = vector.load %arg13[%c0_20, %c0_21] : memref<2x1xf32, #tpu.memory_space<vmem>>, vector<2x1xf32>
    tpu.vector_store %arg13[%c0_20, %c0_21], %36 {strides = array<i32>} : memref<2x1xf32, #tpu.memory_space<vmem>>, vector<2x1xf32>,
    %38 = vector.shape_cast %31 : vector<2x8xf32> to vector<2x8x1xf32>
    %39 = vector.broadcast %38 : vector<2x8x1xf32> to vector<2x8x32xf32>
    %40 = arith.mulf %39, %3 : vector<2x8x32xf32>
    %c0_22 = arith.constant 0 : index
    %c0_23 = arith.constant 0 : index
    %41 = vector.load %arg14[%c0_22, %c0_23] : memref<2x32xf32, #tpu.memory_space<vmem>>, vector<2x32xf32>
    %42 = vector.broadcast %28 : vector<2x1xf32> to vector<2x32xf32>
    %43 = arith.mulf %42, %41 : vector<2x32xf32>
    %cst_24 = arith.constant dense<0.000000e+00> : vector<2x32xf32>
    %44 = vector.multi_reduction <add>, %40, %cst_24 [1] : vector<2x8x32xf32> to vector<2x32xf32>
    %45 = arith.addf %43, %44 : vector<2x32xf32>
    %c0_25 = arith.constant 0 : index
    %c0_26 = arith.constant 0 : index
    %46 = vector.load %arg14[%c0_25, %c0_26] : memref<2x32xf32, #tpu.memory_space<vmem>>, vector<2x32xf32>
    tpu.vector_store %arg14[%c0_25, %c0_26], %45 {strides = array<i32>} : memref<2x32xf32, #tpu.memory_space<vmem>>, vector<2x32xf32>,
    %c0_27 = arith.constant 0 : index
    %c0_28 = arith.constant 0 : index
    %47 = vector.load %arg12[%c0_27, %c0_28] : memref<2x1xf32, #tpu.memory_space<vmem>>, vector<2x1xf32>
    tpu.vector_store %arg12[%c0_27, %c0_28], %26 {strides = array<i32>} : memref<2x1xf32, #tpu.memory_space<vmem>>, vector<2x1xf32>,
    %c0_i32_29 = arith.constant 0 : i32
    %48 = arith.cmpi eq, %arg1, %c0_i32_29 : i32
    %49 = arith.extui %48 : i1 to i32
    %c0_i32_30 = arith.constant 0 : i32
    %50 = arith.cmpi ne, %49, %c0_i32_30 : i32
    scf.if %50 {
      %c0_31 = arith.constant 0 : index
      %c0_32 = arith.constant 0 : index
      %51 = vector.load %arg14[%c0_31, %c0_32] : memref<2x32xf32, #tpu.memory_space<vmem>>, vector<2x32xf32>
      %c0_33 = arith.constant 0 : index
      %c0_34 = arith.constant 0 : index
      %52 = vector.load %arg13[%c0_33, %c0_34] : memref<2x1xf32, #tpu.memory_space<vmem>>, vector<2x1xf32>
      %53 = tpu.reciprocal %52 {approx = true} : vector<2x1xf32> -> vector<2x1xf32>
      %54 = vector.broadcast %53 : vector<2x1xf32> to vector<2x32xf32>
      %55 = arith.mulf %51, %54 : vector<2x32xf32>
      %c0_35 = arith.constant 0 : index
      %c0_36 = arith.constant 0 : index
      %56 = vector.load %arg10[%c0_35, %c0_36] : memref<2x32xf32, #tpu.memory_space<vmem>>, vector<2x32xf32>
      tpu.vector_store %arg10[%c0_35, %c0_36], %55 {strides = array<i32>} : memref<2x32xf32, #tpu.memory_space<vmem>>, vector<2x32xf32>,
    } else {
    }
    return
  }
  func.func @transform_0(%arg0: i32, %arg1: i32) -> (i32, i32) {
    %c0_i32 = arith.constant 0 : i32
    %c0_i32_0 = arith.constant 0 : i32
    return %arg0, %c0_i32 : i32, i32
  }
  func.func @transform_1(%arg0: i32, %arg1: i32) -> (i32, i32, i32) {
    %c0_i32 = arith.constant 0 : i32
    %c0_i32_0 = arith.constant 0 : i32
    return %arg0, %arg1, %c0_i32 : i32, i32, i32
  }
  func.func @transform_2(%arg0: i32, %arg1: i32) -> (i32, i32) {
    %c0_i32 = arith.constant 0 : i32
    return %arg0, %arg1 : i32, i32
  }
  func.func @transform_3(%arg0: i32, %arg1: i32) -> (i32, i32) {
    %c0_i32 = arith.constant 0 : i32
    %c0_i32_0 = arith.constant 0 : i32
    %c0_i32_1 = arith.constant 0 : i32
    return %c0_i32, %c0_i32_0 : i32, i32
  }
  func.func @transform_4(%arg0: i32, %arg1: i32) -> (i32, i32) {
    %c0_i32 = arith.constant 0 : i32
    %c0_i32_0 = arith.constant 0 : i32
    %c0_i32_1 = arith.constant 0 : i32
    return %c0_i32, %c0_i32_0 : i32, i32
  }
  func.func @transform_5(%arg0: i32, %arg1: i32) -> (i32, i32) {
    %c0_i32 = arith.constant 0 : i32
    %c0_i32_0 = arith.constant 0 : i32
    %c0_i32_1 = arith.constant 0 : i32
    return %c0_i32, %c0_i32_0 : i32, i32
  }
  func.func @transform_6(%arg0: i32, %arg1: i32) -> (i32, i32) {
    %c0_i32 = arith.constant 0 : i32
    %c0_i32_0 = arith.constant 0 : i32
    %c0_i32_1 = arith.constant 0 : i32
    return %c0_i32, %c0_i32_0 : i32, i32
  }
  func.func @transform_7(%arg0: i32, %arg1: i32) -> (i32, i32) {
    %c0_i32 = arith.constant 0 : i32
    %c0_i32_0 = arith.constant 0 : i32
    %c0_i32_1 = arith.constant 0 : i32
    return %c0_i32, %c0_i32_0 : i32, i32
  }
  func.func @transform_8(%arg0: i32, %arg1: i32) -> (i32, i32) {
    %c0_i32 = arith.constant 0 : i32
    %c0_i32_0 = arith.constant 0 : i32
    return %arg0, %c0_i32 : i32, i32
  }
}

</mosaic_0001>

<llo_original>
// kernel: tpu_custom_call.1
$region0: #{tpu_custom_call.1}
  #allocation0 [shape = 'u32[]', space=smem, size = 0x4, offset = 0x4, fixed_abs, tag = 'smem constant byte address 0x4 - core index']
  #allocation1 [shape = 'u32[144,128]{1,0:T(1,128)}', space=vmem, size = 0x12000, scoped, tag = 'internal scratch']
  #allocation2 [shape = 'f32[2,32]{1,0:T(2,128)}', space=vmem, size = 0x400, scoped, tag = 'scratch operand']
  #allocation3 [shape = 'f32[2,1]{1,0:T(2,128)}', space=vmem, size = 0x400, scoped, tag = 'scratch operand']
  #allocation4 [shape = 'f32[2,1]{1,0:T(2,128)}', space=vmem, size = 0x400, scoped, tag = 'scratch operand']
  #allocation5 [shape = 'f32[2,32]{1,0:T(2,128)}', space=vmem, size = 0x400, scoped, tag = 'scratch operand']
  %s0 = inlined_call_operand.hbm [shape: f32[2,32], index: 0, kind: input, shape index: {}]
  %s1 = inlined_call_operand.hbm [shape: f32[2,8,32], index: 1, kind: input, shape index: {}]
  %s2 = inlined_call_operand.vmem [shape: f32[2,8], index: 2, kind: input, shape index: {}]
  %s3 = inlined_call_operand.hbm [shape: f32[32,32], index: 3, kind: input, shape index: {}]
  %s4 = inlined_call_operand.vmem [shape: f32[1,32], index: 4, kind: input, shape index: {}]
  %s5 = inlined_call_operand.hbm [shape: f32[32,32], index: 5, kind: input, shape index: {}]
  %s6 = inlined_call_operand.vmem [shape: f32[1,32], index: 6, kind: input, shape index: {}]
  %s7 = inlined_call_operand.vmem [shape: f32[1,32], index: 7, kind: input, shape index: {}]
  %s8 = inlined_call_operand.hbm [shape: f32[2,32], index: 8, kind: output, shape index: {}]
  %s9 = sld [smem:[#allocation0]]
  $region66: #{tpu_custom_call.1} parent=0
    _
  %s11 = ssub.s32 1, %s9
  %s12 = scalar_select 0, %s11, %s9
  $region1: #{tpu_custom_call.1} parent=0
    #allocation6 [shape = 'u8[1024]{0}', space=vmem, size = 0x400, scoped, tag = 'input window, operand 0, single buffered']
    #allocation7 [shape = 's32[1]{0}', space=sflag, size = 0x4, scoped, tag = 'scoped memory for tpu_custom_call.1']
    #allocation8 [shape = 's32[1]{0}', space=sflag, size = 0x4, scoped, tag = 'scoped memory for tpu_custom_call.1']
    #allocation9 [shape = 'u8[8192]{0}', space=vmem, size = 0x2000, scoped, tag = 'input window, operand 1, single buffered']
    #allocation10 [shape = 's32[1]{0}', space=sflag, size = 0x4, scoped, tag = 'scoped memory for tpu_custom_call.1']
    #allocation11 [shape = 'u8[16384]{0}', space=vmem, size = 0x4000, scoped, tag = 'input window, operand 3, single buffered']
    #allocation12 [shape = 'u8[16384]{0}', space=vmem, size = 0x4000, scoped, tag = 'input window, operand 5, single buffered']
    #allocation13 [shape = 's32[1]{0}', space=sflag, size = 0x4, scoped, tag = 'scoped memory for tpu_custom_call.1']
    #allocation14 [shape = 'u8[1024]{0}', space=vmem, size = 0x400, scoped, tag = 'output window, operand 0, single buffered']
    %13 = vsyncpa [#allocation7], 0
    %14 = vsyncpa [#allocation10], 0
    %15 = vsyncpa [#allocation13], 0
    %16 = vsyncpa [#allocation8], 0
    // Predicated region
    $region2: #{tpu_custom_call.1} parent=1 // pred_check
      _
    $region3: #{tpu_custom_call.1} parent=1 // pred_check_branch
      %18 = sbr.rel (0) target = $region5
    $region4: #{tpu_custom_call.1} parent=1 // pred_region
      %s20 = ssub.s32 32, 32
      %21 = vsyncadd [#allocation7], %s20
      %s23 = sshll.u32 [#allocation6], 4
      %s24 = int_to_ptr.vmem [resolvable:$true] %s23
      %26 = dma.hbm_to_vmem [thread:$0]  %s0, 32, %s24, [#allocation7]
    $region5: #{tpu_custom_call.1} parent=1 // pred_fallthru
      _
    // Predicated region
    $region6: #{tpu_custom_call.1} parent=1 // pred_check
      _
    $region7: #{tpu_custom_call.1} parent=1 // pred_check_branch
      %28 = sbr.rel (0) target = $region9
    $region8: #{tpu_custom_call.1} parent=1 // pred_region
      %s30 = ssub.s32 256, 256
      %31 = vsyncadd [#allocation10], %s30
      %s32 = sshll.u32 [#allocation9], 4
      %s33 = int_to_ptr.vmem [resolvable:$true] %s32
      %38 = dma.hbm_to_vmem [thread:$0]  %s1, 256, %s33, [#allocation10], 128, 128, 8
    $region9: #{tpu_custom_call.1} parent=1 // pred_fallthru
      _
    // Predicated region
    $region10: #{tpu_custom_call.1} parent=1 // pred_check
      _
    $region11: #{tpu_custom_call.1} parent=1 // pred_check_branch
      %40 = sbr.rel (0) target = $region13
    $region12: #{tpu_custom_call.1} parent=1 // pred_region
      _
    $region13: #{tpu_custom_call.1} parent=1 // pred_fallthru
      _
    // Predicated region
    $region14: #{tpu_custom_call.1} parent=1 // pred_check
      _
    $region15: #{tpu_custom_call.1} parent=1 // pred_check_branch
      %42 = sbr.rel (0) target = $region17
    $region16: #{tpu_custom_call.1} parent=1 // pred_region
      %s44 = ssub.s32 512, 512
      %45 = vsyncadd [#allocation10], %s44
      %s46 = sshll.u32 [#allocation11], 4
      %s47 = int_to_ptr.vmem [resolvable:$true] %s46
      %52 = dma.hbm_to_vmem [thread:$0]  %s3, 512, %s47, [#allocation10], 128, 128, 8
    $region17: #{tpu_custom_call.1} parent=1 // pred_fallthru
      _
    // Predicated region
    $region18: #{tpu_custom_call.1} parent=1 // pred_check
      _
    $region19: #{tpu_custom_call.1} parent=1 // pred_check_branch
      %54 = sbr.rel (0) target = $region21
    $region20: #{tpu_custom_call.1} parent=1 // pred_region
      _
    $region21: #{tpu_custom_call.1} parent=1 // pred_fallthru
      _
    // Predicated region
    $region22: #{tpu_custom_call.1} parent=1 // pred_check
      _
    $region23: #{tpu_custom_call.1} parent=1 // pred_check_branch
      %56 = sbr.rel (0) target = $region25
    $region24: #{tpu_custom_call.1} parent=1 // pred_region
      %s58 = ssub.s32 512, 512
      %59 = vsyncadd [#allocation13], %s58
      %s60 = sshll.u32 [#allocation12], 4
      %s61 = int_to_ptr.vmem [resolvable:$true] %s60
      %66 = dma.hbm_to_vmem [thread:$0]  %s5, 512, %s61, [#allocation13], 128, 128, 8
    $region25: #{tpu_custom_call.1} parent=1 // pred_fallthru
      _
    // Predicated region
    $region26: #{tpu_custom_call.1} parent=1 // pred_check
      _
    $region27: #{tpu_custom_call.1} parent=1 // pred_check_branch
      %68 = sbr.rel (0) target = $region29
    $region28: #{tpu_custom_call.1} parent=1 // pred_region
      _
    $region29: #{tpu_custom_call.1} parent=1 // pred_fallthru
      _
    // Predicated region
    $region30: #{tpu_custom_call.1} parent=1 // pred_check
      _
    $region31: #{tpu_custom_call.1} parent=1 // pred_check_branch
      %70 = sbr.rel (0) target = $region33
    $region32: #{tpu_custom_call.1} parent=1 // pred_region
      _
    $region33: #{tpu_custom_call.1} parent=1 // pred_fallthru
      _
    // Predicated region
    $region34: #{tpu_custom_call.1} parent=1 // pred_check
      _
    $region35: #{tpu_custom_call.1} parent=1 // pred_check_branch
      %72 = sbr.rel (0) target = $region37
    $region36: #{tpu_custom_call.1} parent=1 // pred_region
      %73 = dma.done [#allocation7], 32
    $region37: #{tpu_custom_call.1} parent=1 // pred_fallthru
      _
    // Predicated region
    $region38: #{tpu_custom_call.1} parent=1 // pred_check
      _
    $region39: #{tpu_custom_call.1} parent=1 // pred_check_branch
      %75 = sbr.rel (0) target = $region41
    $region40: #{tpu_custom_call.1} parent=1 // pred_region
      %76 = dma.done [#allocation10], 256
    $region41: #{tpu_custom_call.1} parent=1 // pred_fallthru
      _
    // Predicated region
    $region42: #{tpu_custom_call.1} parent=1 // pred_check
      _
    $region43: #{tpu_custom_call.1} parent=1 // pred_check_branch
      %78 = sbr.rel (0) target = $region45
    $region44: #{tpu_custom_call.1} parent=1 // pred_region
      %79 = dma.done [#allocation10], 512
    $region45: #{tpu_custom_call.1} parent=1 // pred_fallthru
      _
    // Predicated region
    $region46: #{tpu_custom_call.1} parent=1 // pred_check
      _
    $region47: #{tpu_custom_call.1} parent=1 // pred_check_branch
      %81 = sbr.rel (0) target = $region49
    $region48: #{tpu_custom_call.1} parent=1 // pred_region
      %82 = dma.done [#allocation13], 512
    $region49: #{tpu_custom_call.1} parent=1 // pred_fallthru
      _
    %p83 = scmp.eq.s32.totalorder 0, 0
    // Predicated region
    $region50: #{tpu_custom_call.1} parent=1 // pred_check
      %p84 = pneg %p83
    $region51: #{tpu_custom_call.1} parent=1 // pred_check_branch
      %86 = sbr.rel (%p84) target = $region53
    $region52: #{tpu_custom_call.1} parent=1 // pred_region
      %v87 = vld [vmem:[#allocation6] sm:$0x3]
      %v88 = vld [vmem:[#allocation11] sm:$0xff]
      %v89 = vld [vmem:[#allocation11 + $0x8] sm:$0xff]
      %v90 = vld [vmem:[#allocation11 + $0x10] sm:$0xff]
      %v91 = vld [vmem:[#allocation11 + $0x18] sm:$0xff]
      %v92 = vld [vmem:[%s4] sm:$0x1]
      %v94 = vlaneseq
      %v95 = vshrl.u32 %v94, 7
      %v96 = vsub.s32 0, %v95
      %v97 = vrot.slane %v92, %v96
      %vm99 = vcmask 261120
      %v101 = vsel %vm99, %v87, 0
      %103 = vmatprep.subr.mxu0 0.0
      %104 = vmatpush1.msra.mxu0 0.0
      %105 = vmatprep.subr.mxu0 0.0
      %106 = vmatpush1.msra.mxu0 0.0
      %107 = vmatprep.subr.mxu0 0.0
      %108 = vmatpush1.msra.mxu0 0.0
      %109 = vmatprep.subr.mxu0 0.0
      %110 = vmatpush1.msra.mxu0 0.0
      %111 = vmatprep.subr.mxu0 0.0
      %112 = vmatpush1.msra.mxu0 0.0
      %113 = vmatprep.subr.mxu0 0.0
      %114 = vmatpush1.msra.mxu0 0.0
      %115 = vmatprep.subr.mxu0 0.0
      %116 = vmatpush1.msra.mxu0 0.0
      %117 = vmatprep.subr.mxu0 0.0
      %118 = vmatpush1.msra.mxu0 0.0
      %119 = vmatprep.subr.mxu0 0.0
      %120 = vmatpush1.msra.mxu0 0.0
      %121 = vmatprep.subr.mxu0 0.0
      %122 = vmatpush1.msra.mxu0 0.0
      %123 = vmatprep.subr.mxu0 0.0
      %124 = vmatpush1.msra.mxu0 0.0
      %125 = vmatprep.subr.mxu0 0.0
      %126 = vmatpush1.msra.mxu0 0.0
      %127 = vmatprep.subr.mxu0 0.0
      %128 = vmatpush1.msra.mxu0 %v91
      %129 = vmatprep.subr.mxu0 0.0
      %130 = vmatpush1.msra.mxu0 %v90
      %131 = vmatprep.subr.mxu0 0.0
      %132 = vmatpush1.msra.mxu0 %v89
      %133 = vmatprep.subr.mxu0 0.0
      %134 = vmatpush1.msra.mxu0 %v88
      %135 = vmatprep.subr.mxu0 0.0
      %136 = vmatpush2.msra.mxu0 0.0
      %137 = vmatprep.subr.mxu0 0.0
      %138 = vmatpush2.msra.mxu0 0.0
      %139 = vmatprep.subr.mxu0 0.0
      %140 = vmatpush2.msra.mxu0 0.0
      %141 = vmatprep.subr.mxu0 0.0
      %142 = vmatpush2.msra.mxu0 0.0
      %143 = vmatprep.subr.mxu0 0.0
      %144 = vmatpush2.msra.mxu0 0.0
      %145 = vmatprep.subr.mxu0 0.0
      %146 = vmatpush2.msra.mxu0 0.0
      %147 = vmatprep.subr.mxu0 0.0
      %148 = vmatpush2.msra.mxu0 0.0
      %149 = vmatprep.subr.mxu0 0.0
      %150 = vmatpush2.msra.mxu0 0.0
      %151 = vmatprep.subr.mxu0 0.0
      %152 = vmatpush2.msra.mxu0 0.0
      %153 = vmatprep.subr.mxu0 0.0
      %154 = vmatpush2.msra.mxu0 0.0
      %155 = vmatprep.subr.mxu0 0.0
      %156 = vmatpush2.msra.mxu0 0.0
      %157 = vmatprep.subr.mxu0 0.0
      %158 = vmatpush2.msra.mxu0 0.0
      %159 = vmatprep.subr.mxu0 0.0
      %160 = vmatpush2.msra.mxu0 0.0
      %161 = vmatprep.subr.mxu0 0.0
      %162 = vmatpush2.msra.mxu0 0.0
      %163 = vmatprep.subr.mxu0 0.0
      %164 = vmatpush2.msra.mxu0 0.0
      %165 = vmatprep.subr.mxu0 0.0
      %166 = vmatpush2.msra.mxu0 0.0
      %167 = vmatprep.mubr.f32.mxu0 0.0
      %168 = vmatmul.mubr.f32.gmra.mxu0 %v101
      %v169 = vpop.f32.mrf.mxu0
      %v170 = vadd.f32 %v97, %v169
      %v171 = vpop.f32.mrf.mxu0
      %172 = vdwg.mxu0
      %vm173 = vcmask 254976
      %174 = vst.msk [vmem:[#allocation2] sm:$0x3] %vm173, %v170
      %vm175 = vcmask 1024
      %176 = vst.msk [vmem:[#allocation3] sm:$0x3] %vm175, -inf
      %177 = vst.msk [vmem:[#allocation4] sm:$0x3] %vm175, 0.0
      %178 = vst.msk [vmem:[#allocation5] sm:$0x3] %vm173, 0.0
    $region53: #{tpu_custom_call.1} parent=1 // pred_fallthru
      _
    %v179 = vld [vmem:[#allocation9] sm:$0xff]
    %v180 = vld [vmem:[#allocation9 + $0x8] sm:$0xff]
    %v181 = vld [vmem:[#allocation12] sm:$0xff]
    %v182 = vld [vmem:[#allocation12 + $0x8] sm:$0xff]
    %v183 = vld [vmem:[#allocation12 + $0x10] sm:$0xff]
    %v184 = vld [vmem:[#allocation12 + $0x18] sm:$0xff]
    %v185 = vld [vmem:[%s6] sm:$0x1]
    %v187 = vlaneseq
    %v188 = vshrl.u32 %v187, 7
    %v189 = vsub.s32 0, %v188
    %v190 = vrot.slane %v185, %v189
    %vm192 = vcmask 261120
    %v194 = vsel %vm192, %v179, 0
    %v197 = vsel %vm192, %v180, 0
    %199 = vmatprep.subr.mxu0 0.0
    %200 = vmatpush1.msra.mxu0 0.0
    %201 = vmatprep.subr.mxu0 0.0
    %202 = vmatpush1.msra.mxu0 0.0
    %203 = vmatprep.subr.mxu0 0.0
    %204 = vmatpush1.msra.mxu0 0.0
    %205 = vmatprep.subr.mxu0 0.0
    %206 = vmatpush1.msra.mxu0 0.0
    %207 = vmatprep.subr.mxu0 0.0
    %208 = vmatpush1.msra.mxu0 0.0
    %209 = vmatprep.subr.mxu0 0.0
    %210 = vmatpush1.msra.mxu0 0.0
    %211 = vmatprep.subr.mxu0 0.0
    %212 = vmatpush1.msra.mxu0 0.0
    %213 = vmatprep.subr.mxu0 0.0
    %214 = vmatpush1.msra.mxu0 0.0
    %215 = vmatprep.subr.mxu0 0.0
    %216 = vmatpush1.msra.mxu0 0.0
    %217 = vmatprep.subr.mxu0 0.0
    %218 = vmatpush1.msra.mxu0 0.0
    %219 = vmatprep.subr.mxu0 0.0
    %220 = vmatpush1.msra.mxu0 0.0
    %221 = vmatprep.subr.mxu0 0.0
    %222 = vmatpush1.msra.mxu0 0.0
    %223 = vmatprep.subr.mxu0 0.0
    %224 = vmatpush1.msra.mxu0 %v184
    %225 = vmatprep.subr.mxu0 0.0
    %226 = vmatpush1.msra.mxu0 %v183
    %227 = vmatprep.subr.mxu0 0.0
    %228 = vmatpush1.msra.mxu0 %v182
    %229 = vmatprep.subr.mxu0 0.0
    %230 = vmatpush1.msra.mxu0 %v181
    %231 = vmatprep.subr.mxu0 0.0
    %232 = vmatpush2.msra.mxu0 0.0
    %233 = vmatprep.subr.mxu0 0.0
    %234 = vmatpush2.msra.mxu0 0.0
    %235 = vmatprep.subr.mxu0 0.0
    %236 = vmatpush2.msra.mxu0 0.0
    %237 = vmatprep.subr.mxu0 0.0
    %238 = vmatpush2.msra.mxu0 0.0
    %239 = vmatprep.subr.mxu0 0.0
    %240 = vmatpush2.msra.mxu0 0.0
    %241 = vmatprep.subr.mxu0 0.0
    %242 = vmatpush2.msra.mxu0 0.0
    %243 = vmatprep.subr.mxu0 0.0
    %244 = vmatpush2.msra.mxu0 0.0
    %245 = vmatprep.subr.mxu0 0.0
    %246 = vmatpush2.msra.mxu0 0.0
    %247 = vmatprep.subr.mxu0 0.0
    %248 = vmatpush2.msra.mxu0 0.0
    %249 = vmatprep.subr.mxu0 0.0
    %250 = vmatpush2.msra.mxu0 0.0
    %251 = vmatprep.subr.mxu0 0.0
    %252 = vmatpush2.msra.mxu0 0.0
    %253 = vmatprep.subr.mxu0 0.0
    %254 = vmatpush2.msra.mxu0 0.0
    %255 = vmatprep.subr.mxu0 0.0
    %256 = vmatpush2.msra.mxu0 0.0
    %257 = vmatprep.subr.mxu0 0.0
    %258 = vmatpush2.msra.mxu0 0.0
    %259 = vmatprep.subr.mxu0 0.0
    %260 = vmatpush2.msra.mxu0 0.0
    %261 = vmatprep.subr.mxu0 0.0
    %262 = vmatpush2.msra.mxu0 0.0
    %263 = vmatprep.mubr.f32.mxu0 0.0
    %264 = vmatmul.mubr.f32.gmra.mxu0 %v194
    %v265 = vpop.f32.mrf.mxu0
    %v266 = vadd.f32 %v190, %v265
    %v267 = vpop.f32.mrf.mxu0
    %268 = vmatprep.mubr.f32.mxu0 0.0
    %269 = vmatmul.mubr.f32.gmra.mxu0 %v197
    %v270 = vpop.f32.mrf.mxu0
    %v271 = vadd.f32 %v190, %v270
    %v272 = vpop.f32.mrf.mxu0
    %273 = vdwg.mxu0
    %v274 = vld [vmem:[#allocation2] sm:$0x3]
    %v277 = vunpack.c.l.s4 1966171168
    %v278 = vunpack.c.0.s8 %v277
    %v279 = vlaneseq
    %v280 = vshrl.u32 %v279, 7
    %v281 = vsub.s32 %v278, %v280
    %v282 = vrot.slane %v274, %v281
    %v283 = vcombine.high %v282, %v282
    %v285 = vunpack.c.l.s4 1966171168
    %v286 = vunpack.c.0.s8 %v285
    %v287 = vlaneseq
    %v288 = vshrl.u32 %v287, 7
    %v289 = vsub.s32 %v286, %v288
    %v290 = vrot.slane %v282, %v289
    %v292 = vunpack.c.l.s4 1966171168
    %v293 = vunpack.c.0.s8 %v292
    %v294 = vlaneseq
    %v295 = vshrl.u32 %v294, 7
    %v296 = vsub.s32 %v293, %v295
    %v297 = vrot.slane %v283, %v296
    %v298 = vlaneseq
    %v299 = vshrl.u32 %v298, 7
    %v300 = vsub.s32 0, %v299
    %v301 = vrot.slane %v290, %v300
    %v302 = vlaneseq
    %v303 = vshrl.u32 %v302, 7
    %v304 = vsub.s32 0, %v303
    %v305 = vrot.slane %v297, %v304
    %v308 = vadd.f32 %v301, %v266
    %v309 = vadd.f32 %v305, %v271
    %v310 = vtanh.pop %v308
    %v311 = vtanh.pop %v309
    %v312 = vld [vmem:[%s7] sm:$0x1]
    %v314 = vlaneseq
    %v315 = vshrl.u32 %v314, 7
    %v316 = vsub.s32 0, %v315
    %v317 = vrot.slane %v312, %v316
    %v319 = vmul.f32 %v310, %v317
    %v320 = vmul.f32 %v311, %v317
    %v321 = vsel %vm192, %v319, 0.0
    %322 = vadd.xlane.f32.xlu0 %v321
    %v323 = vpop.xlane.xlu0 %322
    %v324 = vsel %vm192, %v320, 0.0
    %325 = vadd.xlane.f32.xlu0 %v324
    %v326 = vpop.xlane.xlu0 %325
    %v327 = vld [vmem:[%s2] sm:$0x3]
    %v329 = vlaneseq
    %v330 = vshrl.u32 %v329, 7
    %v331 = vsub.s32 0, %v330
    %v332 = vrot.slane %v327, %v331
    %334 = vbcast.lane.b32.xlu0 %v332, 256
    %v335 = vpop.permute.xlu0 %334
    %v336 = vlaneseq
    %v337 = vshrl.u32 %v336, 7
    %v338 = vsub.s32 1, %v337
    %v339 = vrot.slane %v327, %v338
    %341 = vbcast.lane.b32.xlu0 %v339, 256
    %v342 = vpop.permute.xlu0 %341
    %v345 = vadd.f32 %v323, %v335
    %v346 = vadd.f32 %v326, %v342
    %v347 = vld [vmem:[#allocation3] sm:$0x3]
    %350 = vset.pattern.permute.xlu0 0
    %351 = vperm.xlu0 %350, %v345
    %v352 = vpop.permute.xlu0 %351
    %353 = vset.pattern.permute.xlu0 0
    %354 = vperm.xlu0 %353, %v346
    %v355 = vpop.permute.xlu0 %354
    %v356 = vlaneseq
    %v357 = vand.u32 %v356, 127
    %v358 = vlaneseq
    %v359 = vshrl.u32 %v358, 7
    %v360 = vsub.s32 %v357, %v359
    %v361 = vrot.slane %v352, %v360
    %v362 = vlaneseq
    %v363 = vshrl.u32 %v362, 7
    %v364 = vsub.s32 %v357, %v363
    %v365 = vrot.slane %v355, %v364
    %vm366 = vcmask 1041409
    %v367 = vsel %vm366, %v365, %v361
    %vm369 = vcmask 58368
    %v370 = vsel %vm369, %v367, -inf
    %371 = vmax.xlane.f32.xlu0 %v370
    %v372 = vpop.xlane.xlu0 %371
    %v373 = vmax.f32 %v347, %v372
    %v374 = vsub.f32 %v347, %v373
    %v375 = vmul.f32 %v374, 1.442695
    %v376 = vpow.pop %v375
    %378 = vset.pattern.permute.xlu0 0
    %379 = vperm.xlu0 %378, %v373
    %v380 = vpop.permute.xlu0 %379
    %v381 = vlaneseq
    %v382 = vshrl.u32 %v381, 7
    %v383 = vsub.s32 0, %v382
    %v384 = vrot.slane %v380, %v383
    %v385 = vlaneseq
    %v386 = vshrl.u32 %v385, 7
    %v387 = vsub.s32 1, %v386
    %v388 = vrot.slane %v380, %v387
    %v391 = vsub.f32 %v345, %v384
    %v392 = vsub.f32 %v346, %v388
    %v393 = vmul.f32 %v391, 1.442695
    %v394 = vpow.pop %v393
    %v395 = vmul.f32 %v392, 1.442695
    %v396 = vpow.pop %v395
    %v397 = vld [vmem:[#allocation4] sm:$0x3]
    %v398 = vmul.f32 %v376, %v397
    %401 = vset.pattern.permute.xlu0 0
    %402 = vperm.xlu0 %401, %v394
    %v403 = vpop.permute.xlu0 %402
    %404 = vset.pattern.permute.xlu0 0
    %405 = vperm.xlu0 %404, %v396
    %v406 = vpop.permute.xlu0 %405
    %v407 = vlaneseq
    %v408 = vshrl.u32 %v407, 7
    %v409 = vsub.s32 %v357, %v408
    %v410 = vrot.slane %v403, %v409
    %v411 = vlaneseq
    %v412 = vshrl.u32 %v411, 7
    %v413 = vsub.s32 %v357, %v412
    %v414 = vrot.slane %v406, %v413
    %v415 = vsel %vm366, %v414, %v410
    %v417 = vsel %vm369, %v415, 0.0
    %418 = vadd.xlane.f32.xlu0 %v417
    %v419 = vpop.xlane.xlu0 %418
    %v420 = vadd.f32 %v398, %v419
    %vm421 = vcmask 1024
    %422 = vst.msk [vmem:[#allocation4] sm:$0x3] %vm421, %v420
    %v425 = vmul.f32 %v403, %v179
    %v426 = vmul.f32 %v406, %v180
    %v427 = vld [vmem:[#allocation5] sm:$0x3]
    %429 = vset.pattern.permute.xlu0 0
    %430 = vperm.xlu0 %429, %v376
    %v431 = vpop.permute.xlu0 %430
    %v433 = vmul.f32 %v431, %v427
    %v434 = vsel %vm192, %v425, 0.0
    %v435 = vrot.slane %v434, 4
    %v436 = vadd.f32 %v434, %v435
    %v437 = vrot.slane %v436, 2
    %v438 = vadd.f32 %v436, %v437
    %v439 = vrot.slane %v438, 1
    %v440 = vadd.f32 %v438, %v439
    %v441 = vsel %vm192, %v426, 0.0
    %v442 = vrot.slane %v441, 4
    %v443 = vadd.f32 %v441, %v442
    %v444 = vrot.slane %v443, 2
    %v445 = vadd.f32 %v443, %v444
    %v446 = vrot.slane %v445, 1
    %v447 = vadd.f32 %v445, %v446
    %v450 = vsel %vm366, %v447, %v440
    %v452 = vadd.f32 %v433, %v450
    %vm453 = vcmask 254976
    %454 = vst.msk [vmem:[#allocation5] sm:$0x3] %vm453, %v452
    %455 = vst.msk [vmem:[#allocation3] sm:$0x3] %vm421, %v373
    // Predicated region
    $region54: #{tpu_custom_call.1} parent=1 // pred_check
      %p456 = pneg %p83
    $region55: #{tpu_custom_call.1} parent=1 // pred_check_branch
      %458 = sbr.rel (%p456) target = $region57
    $region56: #{tpu_custom_call.1} parent=1 // pred_region
      %v459 = vld [vmem:[#allocation5] sm:$0x3]
      %v460 = vld [vmem:[#allocation4] sm:$0x3]
      %v461 = vrcp.pop %v460
      %463 = vset.pattern.permute.xlu0 0
      %464 = vperm.xlu0 %463, %v461
      %v465 = vpop.permute.xlu0 %464
      %v467 = vmul.f32 %v459, %v465
      %468 = vst.msk [vmem:[#allocation14] sm:$0x3] %vm453, %v467
    $region57: #{tpu_custom_call.1} parent=1 // pred_fallthru
      _
    // Predicated region
    $region58: #{tpu_custom_call.1} parent=1 // pred_check
      _
    $region59: #{tpu_custom_call.1} parent=1 // pred_check_branch
      %470 = sbr.rel (0) target = $region61
    $region60: #{tpu_custom_call.1} parent=1 // pred_region
      %s472 = ssub.s32 32, 32
      %473 = vsyncadd [#allocation8], %s472
      %s475 = sshll.u32 [#allocation14], 4
      %s476 = int_to_ptr.vmem [resolvable:$true] %s475
      %478 = dma.vmem_to_hbm [thread:$0]  %s476, 32, %s8, [#allocation8]
    $region61: #{tpu_custom_call.1} parent=1 // pred_fallthru
      _
    // Predicated region
    $region62: #{tpu_custom_call.1} parent=1 // pred_check
      _
    $region63: #{tpu_custom_call.1} parent=1 // pred_check_branch
      %480 = sbr.rel (0) target = $region65
    $region64: #{tpu_custom_call.1} parent=1 // pred_region
      %481 = dma.done [#allocation8], 32
    $region65: #{tpu_custom_call.1} parent=1 // pred_fallthru
      _
    %482 = vsyncpa [#allocation7], 1
    %483 = vsyncpa [#allocation10], 1
    %484 = vsyncpa [#allocation13], 1
    %485 = vsyncpa [#allocation8], 1

</llo_original>
